<compile_context>
chip_gen: v7x
topology: tpu7x:2x2x1
jax: 0.10.0
libtpu: 0.0.40
codegen_flags: <defaults>
</compile_context>

<pallas_src>
import math
from functools import partial

import jax
import jax.numpy as jnp
from jax.experimental import pallas as pl
from jax.experimental.pallas import tpu as pltpu

# `sigma_zero` is referenced but never defined in the original module; use the
# standard NoisyNet value (matches Kaixhin Rainbow).
SIGMA_ZERO = 0.5


def _round_up(x, m):
    return (x + m - 1) // m * m


def _noisy_linear_kernel(x_ref, wmu_ref, wsig_ref, eps_in_ref, eps_out_ref,
                         bmu_ref, bsig_ref, o_ref, acc_ref):
    k = pl.program_id(2)

    @pl.when(k == 0)
    def _():
        acc_ref[...] = jnp.zeros_like(acc_ref)

    x = x_ref[...]                                     # (tm, tk) bf16
    # eps_in is a lane-major (1, tk) f32 row; apply it to x on the VPU
    # (f32 multiply, then round back to the MXU operand dtype).
    xe = (x.astype(jnp.float32) * eps_in_ref[...]).astype(x.dtype)

    # Two bf16 MXU matmuls with f32 accumulation; weights are already (in, out)
    # so no transpose is needed and no weight-tile VPU combine is done.
    mu_part = jnp.dot(x, wmu_ref[...], preferred_element_type=jnp.float32)
    sig_part = jnp.dot(xe, wsig_ref[...], preferred_element_type=jnp.float32)
    # eps_out is constant over k, so scaling per k-step is exact.
    acc_ref[...] += mu_part + sig_part * eps_out_ref[...]

    @pl.when(k == pl.num_programs(2) - 1)
    def _():
        b_eff = bmu_ref[...] + bsig_ref[...] * eps_out_ref[...]   # (1, tn)
        o_ref[...] = (acc_ref[...] + b_eff).astype(o_ref.dtype)


def _scale_noise(key, size):
    x = jax.random.normal(key, (size,), dtype=jnp.float32)
    return jnp.sign(x) * jnp.sqrt(jnp.abs(x))


def init_noisy_linear_params(key, in_features, out_features, *,
                             tn_cap=512, tk_cap=1024):
    """Mirrors NoisyLinear.reset_parameters / reset_noise.

    Weights are pre-transposed to (in_features, out_features), pre-padded to
    tile multiples, and stored as bf16 -- all ONCE here, so the per-call
    forward wrapper never touches the weight matrices.  Factorized noise is
    stored as lane-major (1, Kp) / (1, Np) f32 rows (bias_epsilon == eps_out).
    """
    k_wmu, k_bmu, k_noise = jax.random.split(key, 3)
    mu_range = 1.0 / math.sqrt(in_features)

    tn = min(tn_cap, _round_up(out_features, 128))
    tk = min(tk_cap, _round_up(in_features, 128))
    Kp = _round_up(in_features, tk)
    Np = _round_up(out_features, tn)

    weight_mu = jax.random.uniform(
        k_wmu, (out_features, in_features), jnp.float32, -mu_range, mu_range)
    weight_sigma = jnp.full((out_features, in_features),
                            SIGMA_ZERO / math.sqrt(in_features), jnp.float32)
    bias_mu = jax.random.uniform(
        k_bmu, (out_features,), jnp.float32, -mu_range, mu_range)
    bias_sigma = jnp.full((out_features,),
                          SIGMA_ZERO / math.sqrt(out_features), jnp.float32)

    def pad_t_bf16(w):   # (out, in) -> padded (Kp, Np) bf16
        wt = w.T.astype(jnp.bfloat16)
        return jnp.pad(wt, ((0, Kp - in_features), (0, Np - out_features)))

    def pad_row(v, P):   # (n,) -> (1, P) f32
        return jnp.pad(v.astype(jnp.float32), (0, P - v.shape[0])).reshape(1, P)

    params = dict(
        in_features=in_features, out_features=out_features,
        Kp=Kp, Np=Np, tk=tk, tn=tn,
        weight_mu_t=pad_t_bf16(weight_mu),
        weight_sigma_t=pad_t_bf16(weight_sigma),
        bias_mu=pad_row(bias_mu, Np),
        bias_sigma=pad_row(bias_sigma, Np),
    )
    return reset_noise(params, k_noise)


def reset_noise(params, key):
    """Redraw factorized noise (eps_in, eps_out); weight_epsilon is never
    materialized -- the kernel forms it implicitly."""
    k_in, k_out = jax.random.split(key)
    in_f, out_f = params["in_features"], params["out_features"]
    Kp, Np = params["Kp"], params["Np"]
    eps_in = _scale_noise(k_in, in_f)
    eps_out = _scale_noise(k_out, out_f)
    new = dict(params)
    new["eps_in"] = jnp.pad(eps_in, (0, Kp - in_f)).reshape(1, Kp)
    new["eps_out"] = jnp.pad(eps_out, (0, Np - out_f)).reshape(1, Np)
    return new


def noisy_linear(params, x):
    """NoisyLinear forward.  x: (B, in_features) f32."""
    B, in_f = x.shape
    assert in_f == params["in_features"]
    out_f, Kp, Np = params["out_features"], params["Kp"], params["Np"]
    tk, tn = params["tk"], params["tn"]

    # Taller M tiles so weights are streamed as few times as possible; bf16
    # x packs (16, 128) per vreg, so round the sublane dim to 16.
    tm = min(512, _round_up(B, 16))
    Bp = _round_up(B, tm)

    xp = x.astype(jnp.bfloat16)
    if (Bp, Kp) != (B, in_f):
        xp = jnp.pad(xp, ((0, Bp - B), (0, Kp - in_f)))

    grid = (Bp // tm, Np // tn, Kp // tk)

    out = pl.pallas_call(
        _noisy_linear_kernel,
        out_shape=jax.ShapeDtypeStruct((Bp, Np), x.dtype),
        grid_spec=pltpu.PrefetchScalarGridSpec(
            num_scalar_prefetch=0,
            grid=grid,
            in_specs=[
                pl.BlockSpec((tm, tk), lambda i, j, k: (i, k)),   # x (bf16)
                pl.BlockSpec((tk, tn), lambda i, j, k: (k, j)),   # W_mu^T (bf16)
                pl.BlockSpec((tk, tn), lambda i, j, k: (k, j)),   # W_sigma^T (bf16)
                pl.BlockSpec((1, tk), lambda i, j, k: (0, k)),    # eps_in row
                pl.BlockSpec((1, tn), lambda i, j, k: (0, j)),    # eps_out row
                pl.BlockSpec((1, tn), lambda i, j, k: (0, j)),    # bias_mu
                pl.BlockSpec((1, tn), lambda i, j, k: (0, j)),    # bias_sigma
            ],
            out_specs=pl.BlockSpec((tm, tn), lambda i, j, k: (i, j)),
            scratch_shapes=[pltpu.VMEM((tm, tn), jnp.float32)],
        ),
        compiler_params=pltpu.CompilerParams(
            dimension_semantics=("parallel", "parallel", "arbitrary")),
    )(xp, params["weight_mu_t"], params["weight_sigma_t"],
      params["eps_in"], params["eps_out"],
      params["bias_mu"], params["bias_sigma"])

    return out[:B, :out_f]


def _run_case(key, batch, in_features, out_features, **init_kw):
    k_params, k_x = jax.random.split(key)
    params = init_noisy_linear_params(k_params, in_features, out_features,
                                      **init_kw)
    x = jax.random.normal(k_x, (batch, in_features), dtype=jnp.float32)

    out = jax.block_until_ready(noisy_linear(params, x))
    assert out.shape == (batch, out_features)

    # Recover unpadded parameters (bf16-stored weights are the ground truth).
    f32 = jnp.float32
    wmu_t = params["weight_mu_t"][:in_features, :out_features].astype(f32)
    wsig_t = params["weight_sigma_t"][:in_features, :out_features].astype(f32)
    eps_in = params["eps_in"][0, :in_features]
    eps_out = params["eps_out"][0, :out_features]
    b_eff = (params["bias_mu"][0, :out_features]
             + params["bias_sigma"][0, :out_features] * eps_out)

    # Tight check vs a reference that mimics the kernel's bf16 operand feeds.
    xb = x.astype(jnp.bfloat16)
    xe = (xb.astype(f32) * eps_in[None, :]).astype(jnp.bfloat16)
    ref_bf16 = (xb.astype(f32) @ wmu_t
                + (xe.astype(f32) @ wsig_t) * eps_out[None, :]
                + b_eff[None, :])
    assert jnp.allclose(out, ref_bf16, atol=2e-3, rtol=2e-3), (
        float(jnp.max(jnp.abs(out - ref_bf16))))

    # Loose check vs the original module semantics in pure f32:
    #   W_eps = outer(eps_out, eps_in); y = x @ (Wmu + Wsig*W_eps).T + b_eff
    w_eff_t = wmu_t + wsig_t * (eps_in[:, None] * eps_out[None, :])
    ref_f32 = x @ w_eff_t + b_eff[None, :]
    assert jnp.allclose(out, ref_f32, atol=1e-1, rtol=5e-2), (
        float(jnp.max(jnp.abs(out - ref_f32))))


if __name__ == "__main__":
    key = jax.random.PRNGKey(0)
    k1, k2, k3 = jax.random.split(key, 3)

    # Lane/sublane-aligned shapes (preferred layout: B % 16, features % 128).
    _run_case(k1, batch=16, in_features=128, out_features=256)
    # Unaligned Rainbow action-head style shapes (exercises wrapper padding).
    _run_case(k2, batch=8, in_features=32, out_features=10)
    # Multi-block grid (K accumulation across 2 k-steps, 2 j-blocks).
    _run_case(k3, batch=40, in_features=256, out_features=256,
              tk_cap=128, tn_cap=128)

    print("KERNEL_OK")
</pallas_src>

<mosaic_0001>
module attributes {stable_mosaic.version = 11 : i64} {
  func.func @_noisy_linear_kernel(%arg0: i32, %arg1: i32, %arg2: i32, %arg3: memref<16x128xbf16, #tpu.memory_space<vmem>>, %arg4: memref<128x256xbf16, #tpu.memory_space<vmem>>, %arg5: memref<128x256xbf16, #tpu.memory_space<vmem>>, %arg6: memref<1x128xf32, #tpu.memory_space<vmem>>, %arg7: memref<1x256xf32, #tpu.memory_space<vmem>>, %arg8: memref<1x256xf32, #tpu.memory_space<vmem>>, %arg9: memref<1x256xf32, #tpu.memory_space<vmem>>, %arg10: memref<16x256xf32, #tpu.memory_space<vmem>>, %arg11: memref<16x256xf32, #tpu.memory_space<vmem>>) attributes {dimension_semantics = [#tpu.dimension_semantics<parallel>, #tpu.dimension_semantics<parallel>, #tpu.dimension_semantics<arbitrary>], iteration_bounds = array<i64: 1, 1, 1>, scalar_prefetch = 0 : i64, scratch_operands = 1 : i64, tpu.core_type = #tpu.core_type<tc>, window_params = [{transform_indices = @transform_0, window_bounds = array<i64: 16, 128>}, {transform_indices = @transform_1, window_bounds = array<i64: 128, 256>}, {transform_indices = @transform_2, window_bounds = array<i64: 128, 256>}, {transform_indices = @transform_3, window_bounds = array<i64: 1, 128>}, {transform_indices = @transform_4, window_bounds = array<i64: 1, 256>}, {transform_indices = @transform_5, window_bounds = array<i64: 1, 256>}, {transform_indices = @transform_6, window_bounds = array<i64: 1, 256>}, {transform_indices = @transform_7, window_bounds = array<i64: 16, 256>}]} {
    %c0_i32 = arith.constant 0 : i32
    %0 = arith.cmpi eq, %arg2, %c0_i32 : i32
    %1 = arith.extui %0 : i1 to i32
    %c0_i32_0 = arith.constant 0 : i32
    %2 = arith.cmpi ne, %1, %c0_i32_0 : i32
    scf.if %2 {
      %cst_17 = arith.constant 0.000000e+00 : f32
      %23 = vector.broadcast %cst_17 : f32 to vector<16x256xf32>
      %c0_18 = arith.constant 0 : index
      %c0_19 = arith.constant 0 : index
      %24 = vector.load %arg11[%c0_18, %c0_19] : memref<16x256xf32, #tpu.memory_space<vmem>>, vector<16x256xf32>
      tpu.vector_store %arg11[%c0_18, %c0_19], %23 {strides = array<i32>} : memref<16x256xf32, #tpu.memory_space<vmem>>, vector<16x256xf32>,
    } else {
    }
    %c0 = arith.constant 0 : index
    %c0_1 = arith.constant 0 : index
    %3 = vector.load %arg3[%c0, %c0_1] : memref<16x128xbf16, #tpu.memory_space<vmem>>, vector<16x128xbf16>
    %4 = arith.extf %3 : vector<16x128xbf16> to vector<16x128xf32>
    %c0_2 = arith.constant 0 : index
    %c0_3 = arith.constant 0 : index
    %5 = vector.load %arg6[%c0_2, %c0_3] : memref<1x128xf32, #tpu.memory_space<vmem>>, vector<1x128xf32>
    %6 = vector.broadcast %5 : vector<1x128xf32> to vector<16x128xf32>
    %7 = arith.mulf %4, %6 : vector<16x128xf32>
    %8 = arith.truncf %7 : vector<16x128xf32> to vector<16x128xbf16>
    %c0_4 = arith.constant 0 : index
    %c0_5 = arith.constant 0 : index
    %9 = vector.load %arg4[%c0_4, %c0_5] : memref<128x256xbf16, #tpu.memory_space<vmem>>, vector<128x256xbf16>
    %cst = arith.constant dense<0.000000e+00> : vector<16x256xf32>
    %10 = tpu.matmul %3, %9, %cst {dimension_numbers = #tpu.dot_dimension_numbers<[1], [0], [0], [1], [0, 0, 1, 1], [], []>} : vector<16x128xbf16>, vector<128x256xbf16>, vector<16x256xf32> -> vector<16x256xf32>
    %c0_6 = arith.constant 0 : index
    %c0_7 = arith.constant 0 : index
    %11 = vector.load %arg5[%c0_6, %c0_7] : memref<128x256xbf16, #tpu.memory_space<vmem>>, vector<128x256xbf16>
    %cst_8 = arith.constant dense<0.000000e+00> : vector<16x256xf32>
    %12 = tpu.matmul %8, %11, %cst_8 {dimension_numbers = #tpu.dot_dimension_numbers<[1], [0], [0], [1], [0, 0, 1, 1], [], []>} : vector<16x128xbf16>, vector<128x256xbf16>, vector<16x256xf32> -> vector<16x256xf32>
    %c0_9 = arith.constant 0 : index
    %c0_10 = arith.constant 0 : index
    %13 = vector.load %arg11[%c0_9, %c0_10] : memref<16x256xf32, #tpu.memory_space<vmem>>, vector<16x256xf32>
    %c0_11 = arith.constant 0 : index
    %c0_12 = arith.constant 0 : index
    %14 = vector.load %arg7[%c0_11, %c0_12] : memref<1x256xf32, #tpu.memory_space<vmem>>, vector<1x256xf32>
    %15 = vector.broadcast %14 : vector<1x256xf32> to vector<16x256xf32>
    %16 = arith.mulf %12, %15 : vector<16x256xf32>
    %17 = arith.addf %10, %16 : vector<16x256xf32>
    %18 = arith.addf %13, %17 : vector<16x256xf32>
    %c0_13 = arith.constant 0 : index
    %c0_14 = arith.constant 0 : index
    %19 = vector.load %arg11[%c0_13, %c0_14] : memref<16x256xf32, #tpu.memory_space<vmem>>, vector<16x256xf32>
    tpu.vector_store %arg11[%c0_13, %c0_14], %18 {strides = array<i32>} : memref<16x256xf32, #tpu.memory_space<vmem>>, vector<16x256xf32>,
    %c0_i32_15 = arith.constant 0 : i32
    %20 = arith.cmpi eq, %arg2, %c0_i32_15 : i32
    %21 = arith.extui %20 : i1 to i32
    %c0_i32_16 = arith.constant 0 : i32
    %22 = arith.cmpi ne, %21, %c0_i32_16 : i32
    scf.if %22 {
      %c0_17 = arith.constant 0 : index
      %c0_18 = arith.constant 0 : index
      %23 = vector.load %arg8[%c0_17, %c0_18] : memref<1x256xf32, #tpu.memory_space<vmem>>, vector<1x256xf32>
      %c0_19 = arith.constant 0 : index
      %c0_20 = arith.constant 0 : index
      %24 = vector.load %arg9[%c0_19, %c0_20] : memref<1x256xf32, #tpu.memory_space<vmem>>, vector<1x256xf32>
      %c0_21 = arith.constant 0 : index
      %c0_22 = arith.constant 0 : index
      %25 = vector.load %arg7[%c0_21, %c0_22] : memref<1x256xf32, #tpu.memory_space<vmem>>, vector<1x256xf32>
      %26 = arith.mulf %24, %25 : vector<1x256xf32>
      %27 = arith.addf %23, %26 : vector<1x256xf32>
      %c0_23 = arith.constant 0 : index
      %c0_24 = arith.constant 0 : index
      %28 = vector.load %arg11[%c0_23, %c0_24] : memref<16x256xf32, #tpu.memory_space<vmem>>, vector<16x256xf32>
      %29 = vector.broadcast %27 : vector<1x256xf32> to vector<16x256xf32>
      %30 = arith.addf %28, %29 : vector<16x256xf32>
      %c0_25 = arith.constant 0 : index
      %c0_26 = arith.constant 0 : index
      %31 = vector.load %arg10[%c0_25, %c0_26] : memref<16x256xf32, #tpu.memory_space<vmem>>, vector<16x256xf32>
      tpu.vector_store %arg10[%c0_25, %c0_26], %30 {strides = array<i32>} : memref<16x256xf32, #tpu.memory_space<vmem>>, vector<16x256xf32>,
    } else {
    }
    return
  }
  func.func @transform_0(%arg0: i32, %arg1: i32, %arg2: i32) -> (i32, i32) {
    %c0_i32 = arith.constant 0 : i32
    return %arg0, %arg2 : i32, i32
  }
  func.func @transform_1(%arg0: i32, %arg1: i32, %arg2: i32) -> (i32, i32) {
    %c0_i32 = arith.constant 0 : i32
    return %arg2, %arg1 : i32, i32
  }
  func.func @transform_2(%arg0: i32, %arg1: i32, %arg2: i32) -> (i32, i32) {
    %c0_i32 = arith.constant 0 : i32
    return %arg2, %arg1 : i32, i32
  }
  func.func @transform_3(%arg0: i32, %arg1: i32, %arg2: i32) -> (i32, i32) {
    %c0_i32 = arith.constant 0 : i32
    %c0_i32_0 = arith.constant 0 : i32
    return %c0_i32, %arg2 : i32, i32
  }
  func.func @transform_4(%arg0: i32, %arg1: i32, %arg2: i32) -> (i32, i32) {
    %c0_i32 = arith.constant 0 : i32
    %c0_i32_0 = arith.constant 0 : i32
    return %c0_i32, %arg1 : i32, i32
  }
  func.func @transform_5(%arg0: i32, %arg1: i32, %arg2: i32) -> (i32, i32) {
    %c0_i32 = arith.constant 0 : i32
    %c0_i32_0 = arith.constant 0 : i32
    return %c0_i32, %arg1 : i32, i32
  }
  func.func @transform_6(%arg0: i32, %arg1: i32, %arg2: i32) -> (i32, i32) {
    %c0_i32 = arith.constant 0 : i32
    %c0_i32_0 = arith.constant 0 : i32
    return %c0_i32, %arg1 : i32, i32
  }
  func.func @transform_7(%arg0: i32, %arg1: i32, %arg2: i32) -> (i32, i32) {
    %c0_i32 = arith.constant 0 : i32
    return %arg0, %arg1 : i32, i32
  }
}

</mosaic_0001>

<llo_original>
// kernel: tpu_custom_call.1
$region0: #{tpu_custom_call.1}
  #allocation0 [shape = 'u32[]', space=smem, size = 0x4, offset = 0x4, fixed_abs, tag = 'smem constant byte address 0x4 - core index']
  #allocation1 [shape = 'u32[144,128]{1,0:T(1,128)}', space=vmem, size = 0x12000, scoped, tag = 'internal scratch']
  #allocation2 [shape = 'f32[16,256]{1,0:T(8,128)}', space=vmem, size = 0x4000, scoped, tag = 'scratch operand']
  %s0 = inlined_call_operand.hbm [shape: bf16[16,128], index: 0, kind: input, shape index: {}]
  %s1 = inlined_call_operand.hbm [shape: bf16[128,256], index: 1, kind: input, shape index: {}]
  %s2 = inlined_call_operand.hbm [shape: bf16[128,256], index: 2, kind: input, shape index: {}]
  %s3 = inlined_call_operand.vmem [shape: f32[1,128], index: 3, kind: input, shape index: {}]
  %s4 = inlined_call_operand.vmem [shape: f32[1,256], index: 4, kind: input, shape index: {}]
  %s5 = inlined_call_operand.vmem [shape: f32[1,256], index: 5, kind: input, shape index: {}]
  %s6 = inlined_call_operand.vmem [shape: f32[1,256], index: 6, kind: input, shape index: {}]
  %s7 = inlined_call_operand.hbm [shape: f32[16,256], index: 7, kind: output, shape index: {}]
  %s8 = sld [smem:[#allocation0]]
  $region58: #{tpu_custom_call.1} parent=0
    _
  %s10 = ssub.s32 1, %s8
  %s11 = scalar_select 0, %s10, %s8
  $region1: #{tpu_custom_call.1} parent=0
    #allocation3 [shape = 'u8[4096]{0}', space=vmem, size = 0x1000, scoped, tag = 'input window, operand 0, single buffered']
    #allocation4 [shape = 's32[1]{0}', space=sflag, size = 0x4, scoped, tag = 'scoped memory for tpu_custom_call.1']
    #allocation5 [shape = 's32[1]{0}', space=sflag, size = 0x4, scoped, tag = 'scoped memory for tpu_custom_call.1']
    #allocation6 [shape = 'u8[65536]{0}', space=vmem, size = 0x10000, scoped, tag = 'input window, operand 1, single buffered']
    #allocation7 [shape = 's32[1]{0}', space=sflag, size = 0x4, scoped, tag = 'scoped memory for tpu_custom_call.1']
    #allocation8 [shape = 'u8[65536]{0}', space=vmem, size = 0x10000, scoped, tag = 'input window, operand 2, single buffered']
    #allocation9 [shape = 'u8[16384]{0}', space=vmem, size = 0x4000, scoped, tag = 'output window, operand 0, single buffered']
    %12 = vsyncpa [#allocation4], 0
    %13 = vsyncpa [#allocation7], 0
    %14 = vsyncpa [#allocation5], 0
    // Predicated region
    $region2: #{tpu_custom_call.1} parent=1 // pred_check
      _
    $region3: #{tpu_custom_call.1} parent=1 // pred_check_branch
      %16 = sbr.rel (0) target = $region5
    $region4: #{tpu_custom_call.1} parent=1 // pred_region
      %s18 = ssub.s32 128, 128
      %19 = vsyncadd [#allocation4], %s18
      %s20 = sshll.u32 [#allocation3], 4
      %s21 = int_to_ptr.vmem [resolvable:$true] %s20
      %26 = dma.hbm_to_vmem [thread:$0]  %s0, 128, %s21, [#allocation4], 64, 64, 4
    $region5: #{tpu_custom_call.1} parent=1 // pred_fallthru
      _
    // Predicated region
    $region6: #{tpu_custom_call.1} parent=1 // pred_check
      _
    $region7: #{tpu_custom_call.1} parent=1 // pred_check_branch
      %28 = sbr.rel (0) target = $region9
    $region8: #{tpu_custom_call.1} parent=1 // pred_region
      %s30 = ssub.s32 2048, 2048
      %31 = vsyncadd [#allocation7], %s30
      %s32 = sshll.u32 [#allocation6], 4
      %s33 = int_to_ptr.vmem [resolvable:$true] %s32
      %38 = dma.hbm_to_vmem [thread:$0]  %s1, 2048, %s33, [#allocation7], 128, 128, 8
    $region9: #{tpu_custom_call.1} parent=1 // pred_fallthru
      _
    // Predicated region
    $region10: #{tpu_custom_call.1} parent=1 // pred_check
      _
    $region11: #{tpu_custom_call.1} parent=1 // pred_check_branch
      %40 = sbr.rel (0) target = $region13
    $region12: #{tpu_custom_call.1} parent=1 // pred_region
      %s42 = ssub.s32 2048, 2048
      %43 = vsyncadd [#allocation7], %s42
      %s44 = sshll.u32 [#allocation8], 4
      %s45 = int_to_ptr.vmem [resolvable:$true] %s44
      %50 = dma.hbm_to_vmem [thread:$0]  %s2, 2048, %s45, [#allocation7], 128, 128, 8
    $region13: #{tpu_custom_call.1} parent=1 // pred_fallthru
      _
    // Predicated region
    $region14: #{tpu_custom_call.1} parent=1 // pred_check
      _
    $region15: #{tpu_custom_call.1} parent=1 // pred_check_branch
      %52 = sbr.rel (0) target = $region17
    $region16: #{tpu_custom_call.1} parent=1 // pred_region
      _
    $region17: #{tpu_custom_call.1} parent=1 // pred_fallthru
      _
    // Predicated region
    $region18: #{tpu_custom_call.1} parent=1 // pred_check
      _
    $region19: #{tpu_custom_call.1} parent=1 // pred_check_branch
      %54 = sbr.rel (0) target = $region21
    $region20: #{tpu_custom_call.1} parent=1 // pred_region
      _
    $region21: #{tpu_custom_call.1} parent=1 // pred_fallthru
      _
    // Predicated region
    $region22: #{tpu_custom_call.1} parent=1 // pred_check
      _
    $region23: #{tpu_custom_call.1} parent=1 // pred_check_branch
      %56 = sbr.rel (0) target = $region25
    $region24: #{tpu_custom_call.1} parent=1 // pred_region
      _
    $region25: #{tpu_custom_call.1} parent=1 // pred_fallthru
      _
    // Predicated region
    $region26: #{tpu_custom_call.1} parent=1 // pred_check
      _
    $region27: #{tpu_custom_call.1} parent=1 // pred_check_branch
      %58 = sbr.rel (0) target = $region29
    $region28: #{tpu_custom_call.1} parent=1 // pred_region
      _
    $region29: #{tpu_custom_call.1} parent=1 // pred_fallthru
      _
    // Predicated region
    $region30: #{tpu_custom_call.1} parent=1 // pred_check
      _
    $region31: #{tpu_custom_call.1} parent=1 // pred_check_branch
      %60 = sbr.rel (0) target = $region33
    $region32: #{tpu_custom_call.1} parent=1 // pred_region
      %61 = dma.done [#allocation4], 128
    $region33: #{tpu_custom_call.1} parent=1 // pred_fallthru
      _
    // Predicated region
    $region34: #{tpu_custom_call.1} parent=1 // pred_check
      _
    $region35: #{tpu_custom_call.1} parent=1 // pred_check_branch
      %63 = sbr.rel (0) target = $region37
    $region36: #{tpu_custom_call.1} parent=1 // pred_region
      %64 = dma.done [#allocation7], 2048
    $region37: #{tpu_custom_call.1} parent=1 // pred_fallthru
      _
    // Predicated region
    $region38: #{tpu_custom_call.1} parent=1 // pred_check
      _
    $region39: #{tpu_custom_call.1} parent=1 // pred_check_branch
      %66 = sbr.rel (0) target = $region41
    $region40: #{tpu_custom_call.1} parent=1 // pred_region
      %67 = dma.done [#allocation7], 2048
    $region41: #{tpu_custom_call.1} parent=1 // pred_fallthru
      _
    %p69 = scmp.eq.s32.totalorder 0, 0
    // Predicated region
    $region42: #{tpu_custom_call.1} parent=1 // pred_check
      %p70 = pneg %p69
    $region43: #{tpu_custom_call.1} parent=1 // pred_check_branch
      %72 = sbr.rel (%p70) target = $region45
    $region44: #{tpu_custom_call.1} parent=1 // pred_region
      %73 = vst [vmem:[#allocation2] sm:$0xff] 0.0
      %74 = vst [vmem:[#allocation2 + $0x8] sm:$0xff] 0.0
      %75 = vst [vmem:[#allocation2 + $0x10] sm:$0xff] 0.0
      %76 = vst [vmem:[#allocation2 + $0x18] sm:$0xff] 0.0
    $region45: #{tpu_custom_call.1} parent=1 // pred_fallthru
      _
    %v77 = vld [vmem:[#allocation3] sm:$0xf]
    %v78 = vld [vmem:[#allocation3 + $0x4] sm:$0xf]
    %v79 = vunpack.c.l.bf16 %v77
    %v80 = vunpack.c.l.bf16 %v78
    %v81 = vld [vmem:[%s3] sm:$0x1]
    %v83 = vlaneseq
    %v84 = vshrl.u32 %v83, 7
    %v85 = vsub.s32 0, %v84
    %v86 = vrot.slane %v81, %v85
    %v88 = vmul.f32 %v79, %v86
    %v89 = vmul.f32 %v80, %v86
    %v90 = vpack.c.bf16 %v89, %v88
    %v91 = vld [vmem:[#allocation6] sm:$0xff]
    %v92 = vld [vmem:[#allocation6 + $0x8] sm:$0xff]
    %v93 = vld [vmem:[#allocation6 + $0x10] sm:$0xff]
    %v94 = vld [vmem:[#allocation6 + $0x18] sm:$0xff]
    %v95 = vld [vmem:[#allocation6 + $0x20] sm:$0xff]
    %v96 = vld [vmem:[#allocation6 + $0x28] sm:$0xff]
    %v97 = vld [vmem:[#allocation6 + $0x30] sm:$0xff]
    %v98 = vld [vmem:[#allocation6 + $0x38] sm:$0xff]
    %v99 = vld [vmem:[#allocation6 + $0x40] sm:$0xff]
    %v100 = vld [vmem:[#allocation6 + $0x48] sm:$0xff]
    %v101 = vld [vmem:[#allocation6 + $0x50] sm:$0xff]
    %v102 = vld [vmem:[#allocation6 + $0x58] sm:$0xff]
    %v103 = vld [vmem:[#allocation6 + $0x60] sm:$0xff]
    %v104 = vld [vmem:[#allocation6 + $0x68] sm:$0xff]
    %v105 = vld [vmem:[#allocation6 + $0x70] sm:$0xff]
    %v106 = vld [vmem:[#allocation6 + $0x78] sm:$0xff]
    %v107 = vld [vmem:[#allocation8] sm:$0xff]
    %v108 = vld [vmem:[#allocation8 + $0x8] sm:$0xff]
    %v109 = vld [vmem:[#allocation8 + $0x10] sm:$0xff]
    %v110 = vld [vmem:[#allocation8 + $0x18] sm:$0xff]
    %v111 = vld [vmem:[#allocation8 + $0x20] sm:$0xff]
    %v112 = vld [vmem:[#allocation8 + $0x28] sm:$0xff]
    %v113 = vld [vmem:[#allocation8 + $0x30] sm:$0xff]
    %v114 = vld [vmem:[#allocation8 + $0x38] sm:$0xff]
    %v115 = vld [vmem:[#allocation8 + $0x40] sm:$0xff]
    %v116 = vld [vmem:[#allocation8 + $0x48] sm:$0xff]
    %v117 = vld [vmem:[#allocation8 + $0x50] sm:$0xff]
    %v118 = vld [vmem:[#allocation8 + $0x58] sm:$0xff]
    %v119 = vld [vmem:[#allocation8 + $0x60] sm:$0xff]
    %v120 = vld [vmem:[#allocation8 + $0x68] sm:$0xff]
    %v121 = vld [vmem:[#allocation8 + $0x70] sm:$0xff]
    %v122 = vld [vmem:[#allocation8 + $0x78] sm:$0xff]
    %v139 = vunpack.c.l.b16 %v107
    %v140 = vunpack.c.h.b16 %v107
    %v141 = vunpack.c.l.b16 %v108
    %v142 = vunpack.c.h.b16 %v108
    %v143 = vunpack.c.l.b16 %v109
    %v144 = vunpack.c.h.b16 %v109
    %v145 = vunpack.c.l.b16 %v110
    %v146 = vunpack.c.h.b16 %v110
    %v147 = vunpack.c.l.b16 %v111
    %v148 = vunpack.c.h.b16 %v111
    %v149 = vunpack.c.l.b16 %v112
    %v150 = vunpack.c.h.b16 %v112
    %v151 = vunpack.c.l.b16 %v113
    %v152 = vunpack.c.h.b16 %v113
    %v153 = vunpack.c.l.b16 %v114
    %v154 = vunpack.c.h.b16 %v114
    %v155 = vunpack.c.l.b16 %v115
    %v156 = vunpack.c.h.b16 %v115
    %v157 = vunpack.c.l.b16 %v116
    %v158 = vunpack.c.h.b16 %v116
    %v159 = vunpack.c.l.b16 %v117
    %v160 = vunpack.c.h.b16 %v117
    %v161 = vunpack.c.l.b16 %v118
    %v162 = vunpack.c.h.b16 %v118
    %v163 = vunpack.c.l.b16 %v119
    %v164 = vunpack.c.h.b16 %v119
    %v165 = vunpack.c.l.b16 %v120
    %v166 = vunpack.c.h.b16 %v120
    %v167 = vunpack.c.l.b16 %v121
    %v168 = vunpack.c.h.b16 %v121
    %v169 = vunpack.c.l.b16 %v122
    %v170 = vunpack.c.h.b16 %v122
    %v171 = vpack.c.b16 %v141, %v139
    %v172 = vpack.c.b16 %v142, %v140
    %v173 = vpack.c.b16 %v145, %v143
    %v174 = vpack.c.b16 %v146, %v144
    %v175 = vpack.c.b16 %v149, %v147
    %v176 = vpack.c.b16 %v150, %v148
    %v177 = vpack.c.b16 %v153, %v151
    %v178 = vpack.c.b16 %v154, %v152
    %v179 = vpack.c.b16 %v157, %v155
    %v180 = vpack.c.b16 %v158, %v156
    %v181 = vpack.c.b16 %v161, %v159
    %v182 = vpack.c.b16 %v162, %v160
    %v183 = vpack.c.b16 %v165, %v163
    %v184 = vpack.c.b16 %v166, %v164
    %v185 = vpack.c.b16 %v169, %v167
    %v186 = vpack.c.b16 %v170, %v168
    %203 = vmatprep.subr.bf16.mxu0 %v172
    %204 = vmatpush1.bf16.msra.mxu0 %v171
    %205 = vmatprep.subr.bf16.mxu0 %v174
    %206 = vmatpush1.bf16.msra.mxu0 %v173
    %207 = vmatprep.subr.bf16.mxu0 %v176
    %208 = vmatpush1.bf16.msra.mxu0 %v175
    %209 = vmatprep.subr.bf16.mxu0 %v178
    %210 = vmatpush1.bf16.msra.mxu0 %v177
    %211 = vmatprep.subr.bf16.mxu0 %v180
    %212 = vmatpush1.bf16.msra.mxu0 %v179
    %213 = vmatprep.subr.bf16.mxu0 %v182
    %214 = vmatpush1.bf16.msra.mxu0 %v181
    %215 = vmatprep.subr.bf16.mxu0 %v184
    %216 = vmatpush1.bf16.msra.mxu0 %v183
    %217 = vmatprep.subr.bf16.mxu0 %v186
    %218 = vmatpush1.bf16.msra.mxu0 %v185
    %219 = vmatprep.subr.bf16.mxu0 0
    %220 = vmatpush1.bf16.msra.mxu0 0
    %221 = vmatprep.subr.bf16.mxu0 0
    %222 = vmatpush1.bf16.msra.mxu0 0
    %223 = vmatprep.subr.bf16.mxu0 0
    %224 = vmatpush1.bf16.msra.mxu0 0
    %225 = vmatprep.subr.bf16.mxu0 0
    %226 = vmatpush1.bf16.msra.mxu0 0
    %227 = vmatprep.subr.bf16.mxu0 0
    %228 = vmatpush1.bf16.msra.mxu0 0
    %229 = vmatprep.subr.bf16.mxu0 0
    %230 = vmatpush1.bf16.msra.mxu0 0
    %231 = vmatprep.subr.bf16.mxu0 0
    %232 = vmatpush1.bf16.msra.mxu0 0
    %233 = vmatprep.subr.bf16.mxu0 0
    %234 = vmatpush1.bf16.msra.mxu0 0
    %235 = vmatprep.mubr.bf16.mxu0 0
    %236 = vmatmul.mubr.bf16.gmra.mrb[0].mxu0 %v90
    %v237 = vpop.f32.mrb[0].mxu0
    %v238 = vadd.f32 0.0, %v237
    %v239 = vpop.f32.mrb[0].mxu0
    %v240 = vadd.f32 0.0, %v239
    %v241 = vpop.f32.mrb[0].mxu0
    %v242 = vadd.f32 0.0, %v241
    %v243 = vpop.f32.mrb[0].mxu0
    %v244 = vadd.f32 0.0, %v243
    %245 = vdwg.mxu0
    %v246 = vld [vmem:[#allocation2] sm:$0xff]
    %v247 = vld [vmem:[#allocation2 + $0x8] sm:$0xff]
    %v248 = vld [vmem:[#allocation2 + $0x10] sm:$0xff]
    %v249 = vld [vmem:[#allocation2 + $0x18] sm:$0xff]
    %v250 = vld [vmem:[%s4] sm:$0x3]
    %v252 = vlaneseq
    %v253 = vshrl.u32 %v252, 7
    %v254 = vsub.s32 0, %v253
    %v255 = vrot.slane %v250, %v254
    %v256 = vlaneseq
    %v257 = vshrl.u32 %v256, 7
    %v258 = vsub.s32 1, %v257
    %v259 = vrot.slane %v250, %v258
    %v262 = vmul.f32 %v238, %v255
    %v263 = vmul.f32 %v240, %v259
    %v264 = vmul.f32 %v242, %v255
    %v265 = vmul.f32 %v244, %v259
    %v268 = vunpack.c.l.b16 %v77
    %v269 = vunpack.c.l.b16 %v78
    %v270 = vpack.c.b16 %v269, %v268
    %v288 = vunpack.c.l.b16 %v91
    %v289 = vunpack.c.h.b16 %v91
    %v290 = vunpack.c.l.b16 %v92
    %v291 = vunpack.c.h.b16 %v92
    %v292 = vunpack.c.l.b16 %v93
    %v293 = vunpack.c.h.b16 %v93
    %v294 = vunpack.c.l.b16 %v94
    %v295 = vunpack.c.h.b16 %v94
    %v296 = vunpack.c.l.b16 %v95
    %v297 = vunpack.c.h.b16 %v95
    %v298 = vunpack.c.l.b16 %v96
    %v299 = vunpack.c.h.b16 %v96
    %v300 = vunpack.c.l.b16 %v97
    %v301 = vunpack.c.h.b16 %v97
    %v302 = vunpack.c.l.b16 %v98
    %v303 = vunpack.c.h.b16 %v98
    %v304 = vunpack.c.l.b16 %v99
    %v305 = vunpack.c.h.b16 %v99
    %v306 = vunpack.c.l.b16 %v100
    %v307 = vunpack.c.h.b16 %v100
    %v308 = vunpack.c.l.b16 %v101
    %v309 = vunpack.c.h.b16 %v101
    %v310 = vunpack.c.l.b16 %v102
    %v311 = vunpack.c.h.b16 %v102
    %v312 = vunpack.c.l.b16 %v103
    %v313 = vunpack.c.h.b16 %v103
    %v314 = vunpack.c.l.b16 %v104
    %v315 = vunpack.c.h.b16 %v104
    %v316 = vunpack.c.l.b16 %v105
    %v317 = vunpack.c.h.b16 %v105
    %v318 = vunpack.c.l.b16 %v106
    %v319 = vunpack.c.h.b16 %v106
    %v320 = vpack.c.b16 %v290, %v288
    %v321 = vpack.c.b16 %v291, %v289
    %v322 = vpack.c.b16 %v294, %v292
    %v323 = vpack.c.b16 %v295, %v293
    %v324 = vpack.c.b16 %v298, %v296
    %v325 = vpack.c.b16 %v299, %v297
    %v326 = vpack.c.b16 %v302, %v300
    %v327 = vpack.c.b16 %v303, %v301
    %v328 = vpack.c.b16 %v306, %v304
    %v329 = vpack.c.b16 %v307, %v305
    %v330 = vpack.c.b16 %v310, %v308
    %v331 = vpack.c.b16 %v311, %v309
    %v332 = vpack.c.b16 %v314, %v312
    %v333 = vpack.c.b16 %v315, %v313
    %v334 = vpack.c.b16 %v318, %v316
    %v335 = vpack.c.b16 %v319, %v317
    %352 = vmatprep.subr.bf16.mxu0 %v321
    %353 = vmatpush1.bf16.msra.mxu0 %v320
    %354 = vmatprep.subr.bf16.mxu0 %v323
    %355 = vmatpush1.bf16.msra.mxu0 %v322
    %356 = vmatprep.subr.bf16.mxu0 %v325
    %357 = vmatpush1.bf16.msra.mxu0 %v324
    %358 = vmatprep.subr.bf16.mxu0 %v327
    %359 = vmatpush1.bf16.msra.mxu0 %v326
    %360 = vmatprep.subr.bf16.mxu0 %v329
    %361 = vmatpush1.bf16.msra.mxu0 %v328
    %362 = vmatprep.subr.bf16.mxu0 %v331
    %363 = vmatpush1.bf16.msra.mxu0 %v330
    %364 = vmatprep.subr.bf16.mxu0 %v333
    %365 = vmatpush1.bf16.msra.mxu0 %v332
    %366 = vmatprep.subr.bf16.mxu0 %v335
    %367 = vmatpush1.bf16.msra.mxu0 %v334
    %368 = vmatprep.subr.bf16.mxu0 0
    %369 = vmatpush1.bf16.msra.mxu0 0
    %370 = vmatprep.subr.bf16.mxu0 0
    %371 = vmatpush1.bf16.msra.mxu0 0
    %372 = vmatprep.subr.bf16.mxu0 0
    %373 = vmatpush1.bf16.msra.mxu0 0
    %374 = vmatprep.subr.bf16.mxu0 0
    %375 = vmatpush1.bf16.msra.mxu0 0
    %376 = vmatprep.subr.bf16.mxu0 0
    %377 = vmatpush1.bf16.msra.mxu0 0
    %378 = vmatprep.subr.bf16.mxu0 0
    %379 = vmatpush1.bf16.msra.mxu0 0
    %380 = vmatprep.subr.bf16.mxu0 0
    %381 = vmatpush1.bf16.msra.mxu0 0
    %382 = vmatprep.subr.bf16.mxu0 0
    %383 = vmatpush1.bf16.msra.mxu0 0
    %384 = vmatprep.mubr.bf16.mxu0 0
    %385 = vmatmul.mubr.bf16.gmra.mrb[0].mxu0 %v270
    %v386 = vpop.f32.mrb[0].mxu0
    %v387 = vadd.f32 %v262, %v386
    %v388 = vpop.f32.mrb[0].mxu0
    %v389 = vadd.f32 %v263, %v388
    %v390 = vpop.f32.mrb[0].mxu0
    %v391 = vadd.f32 %v264, %v390
    %v392 = vpop.f32.mrb[0].mxu0
    %v393 = vadd.f32 %v265, %v392
    %394 = vdwg.mxu0
    %v395 = vadd.f32 %v246, %v387
    %v396 = vadd.f32 %v247, %v389
    %v397 = vadd.f32 %v248, %v391
    %v398 = vadd.f32 %v249, %v393
    %399 = vst [vmem:[#allocation2] sm:$0xff] %v395
    %400 = vst [vmem:[#allocation2 + $0x8] sm:$0xff] %v396
    %401 = vst [vmem:[#allocation2 + $0x10] sm:$0xff] %v397
    %402 = vst [vmem:[#allocation2 + $0x18] sm:$0xff] %v398
    // Predicated region
    $region46: #{tpu_custom_call.1} parent=1 // pred_check
      %p403 = pneg %p69
    $region47: #{tpu_custom_call.1} parent=1 // pred_check_branch
      %405 = sbr.rel (%p403) target = $region49
    $region48: #{tpu_custom_call.1} parent=1 // pred_region
      %v406 = vld [vmem:[%s5] sm:$0x3]
      %v407 = vld [vmem:[%s6] sm:$0x3]
      %v408 = vld [vmem:[%s4] sm:$0x3]
      %v409 = vmul.f32 %v407, %v408
      %v410 = vadd.f32 %v406, %v409
      %v411 = vld [vmem:[#allocation2] sm:$0xff]
      %v412 = vld [vmem:[#allocation2 + $0x8] sm:$0xff]
      %v413 = vld [vmem:[#allocation2 + $0x10] sm:$0xff]
      %v414 = vld [vmem:[#allocation2 + $0x18] sm:$0xff]
      %v416 = vlaneseq
      %v417 = vshrl.u32 %v416, 7
      %v418 = vsub.s32 0, %v417
      %v419 = vrot.slane %v410, %v418
      %v420 = vlaneseq
      %v421 = vshrl.u32 %v420, 7
      %v422 = vsub.s32 1, %v421
      %v423 = vrot.slane %v410, %v422
      %v426 = vadd.f32 %v411, %v419
      %v427 = vadd.f32 %v412, %v423
      %v428 = vadd.f32 %v413, %v419
      %v429 = vadd.f32 %v414, %v423
      %430 = vst [vmem:[#allocation9] sm:$0xff] %v426
      %431 = vst [vmem:[#allocation9 + $0x8] sm:$0xff] %v427
      %432 = vst [vmem:[#allocation9 + $0x10] sm:$0xff] %v428
      %433 = vst [vmem:[#allocation9 + $0x18] sm:$0xff] %v429
    $region49: #{tpu_custom_call.1} parent=1 // pred_fallthru
      _
    // Predicated region
    $region50: #{tpu_custom_call.1} parent=1 // pred_check
      _
    $region51: #{tpu_custom_call.1} parent=1 // pred_check_branch
      %435 = sbr.rel (0) target = $region53
    $region52: #{tpu_custom_call.1} parent=1 // pred_region
      %s437 = ssub.s32 512, 512
      %438 = vsyncadd [#allocation5], %s437
      %s439 = sshll.u32 [#allocation9], 4
      %s440 = int_to_ptr.vmem [resolvable:$true] %s439
      %445 = dma.vmem_to_hbm [thread:$0]  %s440, 512, %s7, [#allocation5], 256, 256, 16
    $region53: #{tpu_custom_call.1} parent=1 // pred_fallthru
      _
    // Predicated region
    $region54: #{tpu_custom_call.1} parent=1 // pred_check
      _
    $region55: #{tpu_custom_call.1} parent=1 // pred_check_branch
      %447 = sbr.rel (0) target = $region57
    $region56: #{tpu_custom_call.1} parent=1 // pred_region
      %448 = dma.done [#allocation5], 512
    $region57: #{tpu_custom_call.1} parent=1 // pred_fallthru
      _
    %449 = vsyncpa [#allocation4], 1
    %450 = vsyncpa [#allocation7], 1
    %451 = vsyncpa [#allocation5], 1

</llo_original>
